<compile_context>
chip_gen: v7x
topology: tpu7x:2x2x1
jax: 0.10.0
libtpu: 0.0.40
codegen_flags: <defaults>
</compile_context>

<pallas_src>
import jax
import jax.numpy as jnp
from jax.experimental import pallas as pl
from jax.experimental.pallas import tpu as pltpu


# ----------------------------- hyper-params (the `param` dict) ---------------
PARAM = dict(
    dropout=0.5,
    extracter_out_dim=16,
    extracter_kernel_num=16,
    extracter_kernel_size=3,
    extracter_vocab_size=100,   # unused: inputs arrive pre-embedded (q_vec_batch)
    extracter_embed_dim=32,
    extracter_padding=1,
    extracter_n_hidden=32,
)

B = 2                                    # batch
S = 8                                    # sequence length
E = PARAM["extracter_embed_dim"]         # 32
K = PARAM["extracter_kernel_num"]        # 16
KSIZE = PARAM["extracter_kernel_size"]   # 3
PAD = PARAM["extracter_padding"]         # 1
H = PARAM["extracter_n_hidden"]          # 32
D = PARAM["extracter_out_dim"]           # 16
S_OUT = S + 2 * PAD - KSIZE + 1          # == S ("same" conv)
F = KSIZE * E                            # conv weight rows per branch (96)
LANES = 128

# Shifted-matmul conv formulation assumes "same" convolution.
assert S_OUT == S, "in-kernel shifted conv assumes same-padding (S_OUT == S)"

# ---- packed weight-slab row offsets (all constants, known at trace time) ----
OFF_TAP = 0                      # KSIZE blocks of (2E, 2K) block-diag conv taps
OFF_WH = KSIZE * 2 * E           # 192: (2K, 2H) block-diag hidden weights
OFF_WO = OFF_WH + 2 * K          # 224: (2H, 2D) block-diag output weights
OFF_W2 = OFF_WO + 2 * H          # 288: (2D, 4) MFC2 weight
OFF_B = OFF_W2 + 2 * D           # 320: 4 bias rows (conv, hidden, out, MFC2)
W_ROWS = OFF_B + 8               # 328 rows total (8-row aligned)
OUT_ROWS = 8                     # lane-dense output slab sublane count


# ----------------------------- Pallas kernel ---------------------------------
def tarm_kernel(
    lens_ref,   # SMEM (2B,) int32: q lengths in [0:B], a lengths in [B:2B]
    q_ref,      # VMEM (B*S, E) f32
    a_ref,      # VMEM (B*S, E) f32
    w_ref,      # VMEM (W_ROWS, 128) f32 packed weight slab
    out_ref,    # VMEM (8, 128) f32: rep in lanes [0,2D), rt in [2D,2D+4)
):
    # q and a embeddings side by side along lanes: (B*S, 2E)
    x = jnp.concatenate([q_ref[...], a_ref[...]], axis=1)

    # ---- Conv1d (both branches) as KSIZE shifted block-diag matmuls ---------
    # out[t] = sum_k x[t + k - PAD] @ wc_bd[k], with rows whose source falls
    # outside the batch's own [0, S) window zeroed (virtual zero padding).
    pos_in_seq = jax.lax.broadcasted_iota(jnp.int32, x.shape, 0) % S

    def shifted(off):
        if off == 0:
            return x
        if off < 0:   # y[t] = x[t + off]
            y = jnp.concatenate(
                [jnp.zeros((-off, x.shape[1]), x.dtype), x[: x.shape[0] + off, :]],
                axis=0)
        else:
            y = jnp.concatenate(
                [x[off:, :], jnp.zeros((off, x.shape[1]), x.dtype)], axis=0)
        valid = jnp.logical_and(pos_in_seq + off >= 0, pos_in_seq + off < S)
        return jnp.where(valid, y, 0.0)   # also kills cross-batch leakage

    acc = None
    for k in range(KSIZE):
        w_tap = w_ref[OFF_TAP + k * 2 * E: OFF_TAP + (k + 1) * 2 * E, 0:2 * K]
        d = jnp.dot(shifted(k - PAD), w_tap, preferred_element_type=jnp.float32)
        acc = d if acc is None else acc + d

    bias = w_ref[OFF_B:OFF_B + 4, 0:2 * H]          # (4, 2H) packed bias rows
    conv = jnp.maximum(acc + bias[0:1, 0:2 * K], 0.0)   # (B*S_OUT, 2K), ReLU

    # ---- length-masked max-pool over the sequence axis ----------------------
    # Post-ReLU values are >= 0, so masking with 0.0 is exact and NaN-safe for
    # real_len == 0.  B=2: tiny per-batch loop; for large B replace with one
    # vectorized masked max + (B, S_OUT, 2K) reshape-reduce.
    pos = jax.lax.broadcasted_iota(jnp.int32, (S_OUT, 2 * K), 0)
    col = jax.lax.broadcasted_iota(jnp.int32, (S_OUT, 2 * K), 1)
    pools = []
    for b in range(B):
        blk = conv[b * S_OUT:(b + 1) * S_OUT, :]                   # (S_OUT, 2K)
        thresh = jnp.where(col < K, lens_ref[b], lens_ref[B + b])
        masked = jnp.where(pos < thresh, blk, 0.0)
        pools.append(jnp.max(masked, axis=0, keepdims=True))       # (1, 2K)
    pooled = jnp.concatenate(pools, axis=0)                        # (B, 2K)

    # ---- fused q/a MLP (block-diagonal weights) -----------------------------
    h = jnp.tanh(
        jnp.dot(pooled, w_ref[OFF_WH:OFF_WH + 2 * K, 0:2 * H],
                preferred_element_type=jnp.float32) + bias[1:2, 0:2 * H])
    rep = jnp.tanh(
        jnp.dot(h, w_ref[OFF_WO:OFF_WO + 2 * H, 0:2 * D],
                preferred_element_type=jnp.float32) + bias[2:3, 0:2 * D])

    # Dropout layer: eval-mode identity.  rep == cat([q_rep, a_rep], 1).

    # ---- MFC2: Linear(2D, 4) + Tanh ------------------------------------------
    rt = jnp.tanh(
        jnp.dot(rep, w_ref[OFF_W2:OFF_W2 + 2 * D, 0:4],
                preferred_element_type=jnp.float32) + bias[3:4, 0:4])

    # ---- single lane-dense output slab (one unmasked store + one DMA) -------
    payload = jnp.concatenate(
        [rep, rt, jnp.zeros((B, LANES - 2 * D - 4), jnp.float32)], axis=1)
    out_ref[...] = jnp.concatenate(
        [payload, jnp.zeros((OUT_ROWS - B, LANES), jnp.float32)], axis=0)


# ----------------------------- wrapper ----------------------------------------
@jax.jit
def tarm_forward(q_vec, a_vec, q_len, a_len, w_slab):
    """q_vec/a_vec: (B, S, E) f32; q_len/a_len: (B,) int; w_slab: packed weights."""
    lens = jnp.concatenate([q_len, a_len]).astype(jnp.int32)       # (2B,)

    smem = pl.BlockSpec(memory_space=pltpu.MemorySpace.SMEM)
    vmem = pl.BlockSpec(memory_space=pltpu.MemorySpace.VMEM)

    flops = (2 * (B * S) * (2 * E) * (2 * K) * KSIZE    # conv taps
             + 2 * B * (2 * K) * (2 * H)                # hidden
             + 2 * B * (2 * H) * (2 * D)                # out
             + 2 * B * (2 * D) * 4)                     # MFC2
    transcendentals = B * (2 * H + 2 * D + 4)           # tanh count
    bytes_accessed = (lens.size * 4 + 2 * B * S * E * 4
                      + W_ROWS * LANES * 4 + OUT_ROWS * LANES * 4)

    out = pl.pallas_call(
        tarm_kernel,
        out_shape=jax.ShapeDtypeStruct((OUT_ROWS, LANES), jnp.float32),
        in_specs=[smem, vmem, vmem, vmem],
        out_specs=vmem,
        cost_estimate=pl.CostEstimate(
            flops=flops, transcendentals=transcendentals,
            bytes_accessed=bytes_accessed),
    )(
        lens,
        q_vec.reshape(B * S, E),   # host-side reshape is a free bitcast
        a_vec.reshape(B * S, E),
        w_slab,
    )

    # Dropout is identity in eval mode; rep is already cat([q_rep, a_rep], 1).
    rep = out[:B, 0:2 * D]
    rt = out[:B, 2 * D:2 * D + 4]
    return rep, rt


# ----------------------------- parameter init / host-side packing -------------
def xavier_uniform(key, fan_in, fan_out):
    bound = (6.0 / (fan_in + fan_out)) ** 0.5
    return jax.random.uniform(key, (fan_in, fan_out), jnp.float32, -bound, bound)


def init_params(key):
    ks = jax.random.split(key, 16)

    def extracter(k0, k1, k2, k3):
        return dict(
            wc=jax.random.normal(k0, (F, K), jnp.float32) * 0.1,   # (KSIZE*E, K)
            bc=jax.random.uniform(k3, (K,), jnp.float32, -0.05, 0.05),
            wh=xavier_uniform(k1, K, H),
            bh=jnp.zeros((H,), jnp.float32),
            wo=xavier_uniform(k2, H, D),
            bo=jnp.zeros((D,), jnp.float32),
        )

    return dict(
        q=extracter(ks[0], ks[1], ks[2], ks[7]),
        a=extracter(ks[3], ks[4], ks[5], ks[8]),
        w2=xavier_uniform(ks[6], 2 * D, 4),          # MFC2.linear1 (xavier_uniform_)
        b2=jnp.zeros((4,), jnp.float32),
    )


def block_diag2(a, b):
    ra, ca = a.shape
    rb, cb = b.shape
    top = jnp.concatenate([a, jnp.zeros((ra, cb), a.dtype)], axis=1)
    bot = jnp.concatenate([jnp.zeros((rb, ca), b.dtype), b], axis=1)
    return jnp.concatenate([top, bot], axis=0)


def pack_params(p):
    """Host-side, one-time packing of ALL weights + biases into a single
    lane-dense (W_ROWS, 128) f32 slab => exactly one weight DMA per call."""
    q, a = p["q"], p["a"]

    def lane_pad(m):
        return jnp.pad(m, ((0, 0), (0, LANES - m.shape[1])))

    blocks = []
    for k in range(KSIZE):                               # conv taps, block-diag
        blocks.append(lane_pad(block_diag2(q["wc"][k * E:(k + 1) * E, :],
                                           a["wc"][k * E:(k + 1) * E, :])))
    blocks.append(lane_pad(block_diag2(q["wh"], a["wh"])))   # (2K, 128)
    blocks.append(lane_pad(block_diag2(q["wo"], a["wo"])))   # (2H, 128)
    blocks.append(lane_pad(p["w2"]))                         # (2D, 128)

    bias_rows = [
        jnp.concatenate([q["bc"], a["bc"]]),   # row 0: conv biases (2K)
        jnp.concatenate([q["bh"], a["bh"]]),   # row 1: hidden biases (2H)
        jnp.concatenate([q["bo"], a["bo"]]),   # row 2: out biases (2D)
        p["b2"],                               # row 3: MFC2 bias (4)
    ]
    bias_blk = jnp.zeros((8, LANES), jnp.float32)
    for i, r in enumerate(bias_rows):
        bias_blk = bias_blk.at[i, :r.shape[0]].set(r)
    blocks.append(bias_blk)

    slab = jnp.concatenate(blocks, axis=0)
    assert slab.shape == (W_ROWS, LANES)
    return slab


# ----------------------------- pure-JAX reference ------------------------------
def im2col(x):
    """(N, S, E) -> (N*S_OUT, KSIZE*E) patches with virtual zero padding.
    Used only by the reference implementation (not in the kernel path)."""
    n = x.shape[0]
    taps = []
    for k in range(KSIZE):
        off = k - PAD
        t0 = max(0, -off)
        t1 = min(S_OUT, S - off)
        parts = []
        if t0 > 0:
            parts.append(jnp.zeros((n, t0, E), x.dtype))
        parts.append(x[:, t0 + off:t1 + off, :])
        if S_OUT - t1 > 0:
            parts.append(jnp.zeros((n, S_OUT - t1, E), x.dtype))
        taps.append(jnp.concatenate(parts, axis=1) if len(parts) > 1 else parts[0])
    patches = jnp.concatenate(taps, axis=-1)
    return patches.reshape(n * S_OUT, F)


def tarm_reference(q_vec, a_vec, q_len, a_len, p):
    def extract(x, lens, e):
        pat = im2col(x).reshape(B, S_OUT, F)
        conv = jnp.einsum("bsf,fk->bsk", pat, e["wc"]) + e["bc"]
        conv = jnp.maximum(conv, 0.0)
        pos = jnp.arange(S_OUT)[None, :, None]
        pooled = jnp.where(pos < lens[:, None, None], conv, 0.0).max(axis=1)
        h = jnp.tanh(pooled @ e["wh"] + e["bh"])
        return jnp.tanh(h @ e["wo"] + e["bo"])

    rep = jnp.concatenate(
        [extract(q_vec, q_len, p["q"]), extract(a_vec, a_len, p["a"])], axis=1)
    rt = jnp.tanh(rep @ p["w2"] + p["b2"])
    return rep, rt


# ----------------------------- main -------------------------------------------
if __name__ == "__main__":
    key = jax.random.PRNGKey(0)
    k_in_q, k_in_a, k_w = jax.random.split(key, 3)

    q_vec = jax.random.normal(k_in_q, (B, S, E), jnp.float32)
    a_vec = jax.random.normal(k_in_a, (B, S, E), jnp.float32)
    q_len = jnp.array([8, 5], dtype=jnp.int32)
    a_len = jnp.array([6, 8], dtype=jnp.int32)

    raw = init_params(k_w)
    w_slab = pack_params(raw)

    tar_drop_vec, rt = tarm_forward(q_vec, a_vec, q_len, a_len, w_slab)
    jax.block_until_ready((tar_drop_vec, rt))

    assert tar_drop_vec.shape == (B, 2 * D) and rt.shape == (B, 4)
    assert bool(jnp.all(jnp.isfinite(tar_drop_vec))) and bool(jnp.all(jnp.isfinite(rt)))

    ref_rep, ref_rt = tarm_reference(q_vec, a_vec, q_len, a_len, raw)
    assert bool(jnp.allclose(tar_drop_vec, ref_rep, rtol=2e-3, atol=2e-3))
    assert bool(jnp.allclose(rt, ref_rt, rtol=2e-3, atol=2e-3))

    print("KERNEL_OK")
</pallas_src>

<mosaic_0001>
module attributes {stable_mosaic.version = 11 : i64} {
  func.func @tarm_kernel(%arg0: memref<4xi32, #tpu.memory_space<smem>>, %arg1: memref<16x32xf32, #tpu.memory_space<vmem>>, %arg2: memref<16x32xf32, #tpu.memory_space<vmem>>, %arg3: memref<328x128xf32, #tpu.memory_space<vmem>>, %arg4: memref<8x128xf32, #tpu.memory_space<vmem>>) attributes {dimension_semantics = [], scalar_prefetch = 0 : i64, scratch_operands = 0 : i64, tpu.core_type = #tpu.core_type<tc>} {
    %c0 = arith.constant 0 : index
    %c0_0 = arith.constant 0 : index
    %0 = vector.load %arg1[%c0, %c0_0] : memref<16x32xf32, #tpu.memory_space<vmem>>, vector<16x32xf32>
    %c0_1 = arith.constant 0 : index
    %c0_2 = arith.constant 0 : index
    %1 = vector.load %arg2[%c0_1, %c0_2] : memref<16x32xf32, #tpu.memory_space<vmem>>, vector<16x32xf32>
    %2 = tpu.concatenate %0, %1 in 1 : vector<16x32xf32>, vector<16x32xf32> -> vector<16x64xf32>
    %3 = tpu.iota {dimensions = array<i32: 0>} : vector<16x64xi32>
    %c8_i32 = arith.constant 8 : i32
    %c0_i32 = arith.constant 0 : i32
    %4 = arith.cmpi eq, %c8_i32, %c0_i32 : i32
    %c1_i32 = arith.constant 1 : i32
    %5 = arith.select %4, %c1_i32, %c8_i32 : i32
    %6 = vector.broadcast %5 : i32 to vector<16x64xi32>
    %7 = arith.remsi %3, %6 : vector<16x64xi32>
    %c0_i32_3 = arith.constant 0 : i32
    %8 = vector.broadcast %c0_i32_3 : i32 to vector<16x64xi32>
    %9 = arith.cmpi ne, %7, %8 : vector<16x64xi32>
    %c0_i32_4 = arith.constant 0 : i32
    %10 = vector.broadcast %c0_i32_4 : i32 to vector<16x64xi32>
    %11 = arith.cmpi slt, %7, %10 : vector<16x64xi32>
    %c0_i32_5 = arith.constant 0 : i32
    %12 = arith.cmpi slt, %5, %c0_i32_5 : i32
    %13 = vector.broadcast %12 : i1 to vector<16x64xi1>
    %14 = vector.broadcast %13 : vector<16x64xi1> to vector<16x64xi1>
    %15 = arith.xori %11, %14 : vector<16x64xi1>
    %16 = arith.andi %15, %9 : vector<16x64xi1>
    %17 = vector.broadcast %5 : i32 to vector<16x64xi32>
    %18 = arith.addi %7, %17 : vector<16x64xi32>
    %19 = arith.select %16, %18, %7 : vector<16x64xi1>, vector<16x64xi32>
    %c0_6 = arith.constant 0 : index
    %c0_7 = arith.constant 0 : index
    %20 = vector.load %arg3[%c0_6, %c0_7] : memref<328x128xf32, #tpu.memory_space<vmem>>, vector<64x32xf32>
    %cst = arith.constant 0.000000e+00 : f32
    %21 = vector.broadcast %cst : f32 to vector<1x64xf32>
    %22 = vector.extract_strided_slice %2 {offsets = [0, 0], sizes = [15, 64], strides = [1, 1]} : vector<16x64xf32> to vector<15x64xf32>
    %23 = tpu.concatenate %21, %22 in 0 : vector<1x64xf32>, vector<15x64xf32> -> vector<16x64xf32>
    %c-1_i32 = arith.constant -1 : i32
    %24 = vector.broadcast %c-1_i32 : i32 to vector<16x64xi32>
    %25 = arith.addi %19, %24 : vector<16x64xi32>
    %c0_i32_8 = arith.constant 0 : i32
    %26 = vector.broadcast %c0_i32_8 : i32 to vector<16x64xi32>
    %27 = arith.cmpi sge, %25, %26 : vector<16x64xi32>
    %c-1_i32_9 = arith.constant -1 : i32
    %28 = vector.broadcast %c-1_i32_9 : i32 to vector<16x64xi32>
    %29 = arith.addi %19, %28 : vector<16x64xi32>
    %c8_i32_10 = arith.constant 8 : i32
    %30 = vector.broadcast %c8_i32_10 : i32 to vector<16x64xi32>
    %31 = arith.cmpi slt, %29, %30 : vector<16x64xi32>
    %32 = arith.andi %27, %31 : vector<16x64xi1>
    %cst_11 = arith.constant 0.000000e+00 : f32
    %33 = vector.broadcast %cst_11 : f32 to vector<16x64xf32>
    %34 = arith.select %32, %23, %33 : vector<16x64xi1>, vector<16x64xf32>
    %cst_12 = arith.constant dense<0.000000e+00> : vector<16x32xf32>
    %35 = tpu.matmul %34, %20, %cst_12 {dimension_numbers = #tpu.dot_dimension_numbers<[1], [0], [0], [1], [0, 0, 1, 1], [], []>} : vector<16x64xf32>, vector<64x32xf32>, vector<16x32xf32> -> vector<16x32xf32>
    %c64 = arith.constant 64 : index
    %c0_13 = arith.constant 0 : index
    %36 = vector.load %arg3[%c64, %c0_13] : memref<328x128xf32, #tpu.memory_space<vmem>>, vector<64x32xf32>
    %cst_14 = arith.constant dense<0.000000e+00> : vector<16x32xf32>
    %37 = tpu.matmul %2, %36, %cst_14 {dimension_numbers = #tpu.dot_dimension_numbers<[1], [0], [0], [1], [0, 0, 1, 1], [], []>} : vector<16x64xf32>, vector<64x32xf32>, vector<16x32xf32> -> vector<16x32xf32>
    %38 = arith.addf %35, %37 : vector<16x32xf32>
    %c128 = arith.constant 128 : index
    %c0_15 = arith.constant 0 : index
    %39 = vector.load %arg3[%c128, %c0_15] : memref<328x128xf32, #tpu.memory_space<vmem>>, vector<64x32xf32>
    %40 = vector.extract_strided_slice %2 {offsets = [1, 0], sizes = [15, 64], strides = [1, 1]} : vector<16x64xf32> to vector<15x64xf32>
    %cst_16 = arith.constant 0.000000e+00 : f32
    %41 = vector.broadcast %cst_16 : f32 to vector<1x64xf32>
    %42 = tpu.concatenate %40, %41 in 0 : vector<15x64xf32>, vector<1x64xf32> -> vector<16x64xf32>
    %c1_i32_17 = arith.constant 1 : i32
    %43 = vector.broadcast %c1_i32_17 : i32 to vector<16x64xi32>
    %44 = arith.addi %19, %43 : vector<16x64xi32>
    %c0_i32_18 = arith.constant 0 : i32
    %45 = vector.broadcast %c0_i32_18 : i32 to vector<16x64xi32>
    %46 = arith.cmpi sge, %44, %45 : vector<16x64xi32>
    %c1_i32_19 = arith.constant 1 : i32
    %47 = vector.broadcast %c1_i32_19 : i32 to vector<16x64xi32>
    %48 = arith.addi %19, %47 : vector<16x64xi32>
    %c8_i32_20 = arith.constant 8 : i32
    %49 = vector.broadcast %c8_i32_20 : i32 to vector<16x64xi32>
    %50 = arith.cmpi slt, %48, %49 : vector<16x64xi32>
    %51 = arith.andi %46, %50 : vector<16x64xi1>
    %cst_21 = arith.constant 0.000000e+00 : f32
    %52 = vector.broadcast %cst_21 : f32 to vector<16x64xf32>
    %53 = arith.select %51, %42, %52 : vector<16x64xi1>, vector<16x64xf32>
    %cst_22 = arith.constant dense<0.000000e+00> : vector<16x32xf32>
    %54 = tpu.matmul %53, %39, %cst_22 {dimension_numbers = #tpu.dot_dimension_numbers<[1], [0], [0], [1], [0, 0, 1, 1], [], []>} : vector<16x64xf32>, vector<64x32xf32>, vector<16x32xf32> -> vector<16x32xf32>
    %55 = arith.addf %38, %54 : vector<16x32xf32>
    %c320 = arith.constant 320 : index
    %c0_23 = arith.constant 0 : index
    %56 = vector.load %arg3[%c320, %c0_23] : memref<328x128xf32, #tpu.memory_space<vmem>>, vector<4x64xf32>
    %57 = vector.extract_strided_slice %56 {offsets = [0, 0], sizes = [1, 32], strides = [1, 1]} : vector<4x64xf32> to vector<1x32xf32>
    %58 = vector.broadcast %57 : vector<1x32xf32> to vector<16x32xf32>
    %59 = arith.addf %55, %58 : vector<16x32xf32>
    %cst_24 = arith.constant 0.000000e+00 : f32
    %60 = vector.broadcast %cst_24 : f32 to vector<16x32xf32>
    %61 = arith.maximumf %59, %60 : vector<16x32xf32>
    %62 = tpu.iota {dimensions = array<i32: 0>} : vector<8x32xi32>
    %63 = tpu.iota {dimensions = array<i32: 1>} : vector<8x32xi32>
    %64 = vector.extract_strided_slice %61 {offsets = [0, 0], sizes = [8, 32], strides = [1, 1]} : vector<16x32xf32> to vector<8x32xf32>
    %c16_i32 = arith.constant 16 : i32
    %65 = vector.broadcast %c16_i32 : i32 to vector<8x32xi32>
    %66 = arith.cmpi slt, %63, %65 : vector<8x32xi32>
    %c0_25 = arith.constant 0 : index
    %67 = memref.load %arg0[%c0_25] : memref<4xi32, #tpu.memory_space<smem>>
    %c2 = arith.constant 2 : index
    %68 = memref.load %arg0[%c2] : memref<4xi32, #tpu.memory_space<smem>>
    %69 = vector.broadcast %67 : i32 to vector<8x32xi32>
    %70 = vector.broadcast %68 : i32 to vector<8x32xi32>
    %71 = arith.select %66, %69, %70 : vector<8x32xi1>, vector<8x32xi32>
    %72 = arith.cmpi slt, %62, %71 : vector<8x32xi32>
    %cst_26 = arith.constant 0.000000e+00 : f32
    %73 = vector.broadcast %cst_26 : f32 to vector<8x32xf32>
    %74 = arith.select %72, %64, %73 : vector<8x32xi1>, vector<8x32xf32>
    %cst_27 = arith.constant dense<0xFF800000> : vector<32xf32>
    %75 = vector.multi_reduction <maximumf>, %74, %cst_27 [0] : vector<8x32xf32> to vector<32xf32>
    %76 = vector.shape_cast %75 : vector<32xf32> to vector<1x32xf32>
    %77 = vector.extract_strided_slice %61 {offsets = [8, 0], sizes = [8, 32], strides = [1, 1]} : vector<16x32xf32> to vector<8x32xf32>
    %c16_i32_28 = arith.constant 16 : i32
    %78 = vector.broadcast %c16_i32_28 : i32 to vector<8x32xi32>
    %79 = arith.cmpi slt, %63, %78 : vector<8x32xi32>
    %c1 = arith.constant 1 : index
    %80 = memref.load %arg0[%c1] : memref<4xi32, #tpu.memory_space<smem>>
    %c3 = arith.constant 3 : index
    %81 = memref.load %arg0[%c3] : memref<4xi32, #tpu.memory_space<smem>>
    %82 = vector.broadcast %80 : i32 to vector<8x32xi32>
    %83 = vector.broadcast %81 : i32 to vector<8x32xi32>
    %84 = arith.select %79, %82, %83 : vector<8x32xi1>, vector<8x32xi32>
    %85 = arith.cmpi slt, %62, %84 : vector<8x32xi32>
    %cst_29 = arith.constant 0.000000e+00 : f32
    %86 = vector.broadcast %cst_29 : f32 to vector<8x32xf32>
    %87 = arith.select %85, %77, %86 : vector<8x32xi1>, vector<8x32xf32>
    %cst_30 = arith.constant dense<0xFF800000> : vector<32xf32>
    %88 = vector.multi_reduction <maximumf>, %87, %cst_30 [0] : vector<8x32xf32> to vector<32xf32>
    %89 = vector.shape_cast %88 : vector<32xf32> to vector<1x32xf32>
    %90 = tpu.concatenate %76, %89 in 0 : vector<1x32xf32>, vector<1x32xf32> -> vector<2x32xf32>
    %c192 = arith.constant 192 : index
    %c0_31 = arith.constant 0 : index
    %91 = vector.load %arg3[%c192, %c0_31] : memref<328x128xf32, #tpu.memory_space<vmem>>, vector<32x64xf32>
    %cst_32 = arith.constant dense<0.000000e+00> : vector<2x64xf32>
    %92 = tpu.matmul %90, %91, %cst_32 {dimension_numbers = #tpu.dot_dimension_numbers<[1], [0], [0], [1], [0, 0, 1, 1], [], []>} : vector<2x32xf32>, vector<32x64xf32>, vector<2x64xf32> -> vector<2x64xf32>
    %93 = vector.extract_strided_slice %56 {offsets = [1, 0], sizes = [1, 64], strides = [1, 1]} : vector<4x64xf32> to vector<1x64xf32>
    %94 = vector.broadcast %93 : vector<1x64xf32> to vector<2x64xf32>
    %95 = arith.addf %92, %94 : vector<2x64xf32>
    %96 = math.tanh %95 : vector<2x64xf32>
    %c224 = arith.constant 224 : index
    %c0_33 = arith.constant 0 : index
    %97 = vector.load %arg3[%c224, %c0_33] : memref<328x128xf32, #tpu.memory_space<vmem>>, vector<64x32xf32>
    %cst_34 = arith.constant dense<0.000000e+00> : vector<2x32xf32>
    %98 = tpu.matmul %96, %97, %cst_34 {dimension_numbers = #tpu.dot_dimension_numbers<[1], [0], [0], [1], [0, 0, 1, 1], [], []>} : vector<2x64xf32>, vector<64x32xf32>, vector<2x32xf32> -> vector<2x32xf32>
    %99 = vector.extract_strided_slice %56 {offsets = [2, 0], sizes = [1, 32], strides = [1, 1]} : vector<4x64xf32> to vector<1x32xf32>
    %100 = vector.broadcast %99 : vector<1x32xf32> to vector<2x32xf32>
    %101 = arith.addf %98, %100 : vector<2x32xf32>
    %102 = math.tanh %101 : vector<2x32xf32>
    %c288 = arith.constant 288 : index
    %c0_35 = arith.constant 0 : index
    %103 = vector.load %arg3[%c288, %c0_35] : memref<328x128xf32, #tpu.memory_space<vmem>>, vector<32x4xf32>
    %cst_36 = arith.constant dense<0.000000e+00> : vector<2x4xf32>
    %104 = tpu.matmul %102, %103, %cst_36 {dimension_numbers = #tpu.dot_dimension_numbers<[1], [0], [0], [1], [0, 0, 1, 1], [], []>} : vector<2x32xf32>, vector<32x4xf32>, vector<2x4xf32> -> vector<2x4xf32>
    %105 = vector.extract_strided_slice %56 {offsets = [3, 0], sizes = [1, 4], strides = [1, 1]} : vector<4x64xf32> to vector<1x4xf32>
    %106 = vector.broadcast %105 : vector<1x4xf32> to vector<2x4xf32>
    %107 = arith.addf %104, %106 : vector<2x4xf32>
    %108 = math.tanh %107 : vector<2x4xf32>
    %cst_37 = arith.constant 0.000000e+00 : f32
    %109 = vector.broadcast %cst_37 : f32 to vector<2x92xf32>
    %110 = tpu.concatenate %102, %108, %109 in 1 : vector<2x32xf32>, vector<2x4xf32>, vector<2x92xf32> -> vector<2x128xf32>
    %cst_38 = arith.constant 0.000000e+00 : f32
    %111 = vector.broadcast %cst_38 : f32 to vector<6x128xf32>
    %112 = tpu.concatenate %110, %111 in 0 : vector<2x128xf32>, vector<6x128xf32> -> vector<8x128xf32>
    %c0_39 = arith.constant 0 : index
    %c0_40 = arith.constant 0 : index
    %113 = vector.load %arg4[%c0_39, %c0_40] : memref<8x128xf32, #tpu.memory_space<vmem>>, vector<8x128xf32>
    tpu.vector_store %arg4[%c0_39, %c0_40], %112 {strides = array<i32>} : memref<8x128xf32, #tpu.memory_space<vmem>>, vector<8x128xf32>,
    return
  }
}

</mosaic_0001>

<llo_original>
// kernel: tarm_forward.1
$region0: #{tarm_forward.1}
  #allocation0 [shape = 'u32[]', space=smem, size = 0x4, offset = 0x4, fixed_abs, tag = 'smem constant byte address 0x4 - core index']
  #allocation1 [shape = 'u32[144,128]{1,0:T(1,128)}', space=vmem, size = 0x12000, scoped, tag = 'internal scratch']
  %s0 = inlined_call_operand.vmem [shape: s32[4], index: 0, kind: input, shape index: {}]
  %s1 = inlined_call_operand.hbm [shape: f32[16,32], index: 1, kind: input, shape index: {}]
  %s2 = inlined_call_operand.hbm [shape: f32[16,32], index: 2, kind: input, shape index: {}]
  %s3 = inlined_call_operand.hbm [shape: f32[328,128], index: 3, kind: input, shape index: {}]
  %s4 = inlined_call_operand.vmem [shape: f32[8,128], index: 4, kind: output, shape index: {}]
  %s5 = sld [smem:[#allocation0]]
  $region42: #{tarm_forward.1} parent=0
    _
  %s7 = ssub.s32 1, %s5
  %s8 = scalar_select 0, %s7, %s5
  $region1: #{tarm_forward.1} parent=0
    #allocation2 [shape = 'u8[512]{0}', space=smem, size = 0x200, scoped, tag = 'input window, operand 0, single buffered']
    #allocation3 [shape = 's32[1]{0}', space=sflag, size = 0x4, scoped, tag = 'scoped memory for tarm_forward.1']
    #allocation4 [shape = 's32[1]{0}', space=sflag, size = 0x4, scoped, tag = 'scoped memory for tarm_forward.1']
    #allocation5 [shape = 'u8[8192]{0}', space=vmem, size = 0x2000, scoped, tag = 'input window, operand 1, single buffered']
    #allocation6 [shape = 'u8[8192]{0}', space=vmem, size = 0x2000, scoped, tag = 'input window, operand 2, single buffered']
    #allocation7 [shape = 's32[1]{0}', space=sflag, size = 0x4, scoped, tag = 'scoped memory for tarm_forward.1']
    #allocation8 [shape = 'u8[167936]{0}', space=vmem, size = 0x29000, scoped, tag = 'input window, operand 3, single buffered']
    %9 = vsyncpa [#allocation4], 0
    %10 = vsyncpa [#allocation3], 0
    %11 = vsyncpa [#allocation7], 0
    // Predicated region
    $region2: #{tarm_forward.1} parent=1 // pred_check
      _
    $region3: #{tarm_forward.1} parent=1 // pred_check_branch
      %13 = sbr.rel (0) target = $region5
    $region4: #{tarm_forward.1} parent=1 // pred_region
      %s15 = ssub.s32 16, 16
      %16 = vsyncadd [#allocation4], %s15
      %s18 = sshll.u32 %s0, 4
      %s19 = int_to_ptr.vmem [resolvable:$true] %s18
      %21 = dma.vmem_to_smem %s19, 16, [#allocation2], [#allocation4]
    $region5: #{tarm_forward.1} parent=1 // pred_fallthru
      _
    // Predicated region
    $region6: #{tarm_forward.1} parent=1 // pred_check
      _
    $region7: #{tarm_forward.1} parent=1 // pred_check_branch
      %23 = sbr.rel (0) target = $region9
    $region8: #{tarm_forward.1} parent=1 // pred_region
      %s25 = ssub.s32 256, 256
      %26 = vsyncadd [#allocation3], %s25
      %s27 = sshll.u32 [#allocation5], 4
      %s28 = int_to_ptr.vmem [resolvable:$true] %s27
      %33 = dma.hbm_to_vmem [thread:$0]  %s1, 256, %s28, [#allocation3], 128, 128, 8
    $region9: #{tarm_forward.1} parent=1 // pred_fallthru
      _
    // Predicated region
    $region10: #{tarm_forward.1} parent=1 // pred_check
      _
    $region11: #{tarm_forward.1} parent=1 // pred_check_branch
      %35 = sbr.rel (0) target = $region13
    $region12: #{tarm_forward.1} parent=1 // pred_region
      %s37 = ssub.s32 256, 256
      %38 = vsyncadd [#allocation7], %s37
      %s39 = sshll.u32 [#allocation6], 4
      %s40 = int_to_ptr.vmem [resolvable:$true] %s39
      %45 = dma.hbm_to_vmem [thread:$0]  %s2, 256, %s40, [#allocation7], 128, 128, 8
    $region13: #{tarm_forward.1} parent=1 // pred_fallthru
      _
    // Predicated region
    $region14: #{tarm_forward.1} parent=1 // pred_check
      _
    $region15: #{tarm_forward.1} parent=1 // pred_check_branch
      %47 = sbr.rel (0) target = $region17
    $region16: #{tarm_forward.1} parent=1 // pred_region
      %s49 = ssub.s32 5248, 5248
      %50 = vsyncadd [#allocation7], %s49
      %s51 = sshll.u32 [#allocation8], 4
      %s52 = int_to_ptr.vmem [resolvable:$true] %s51
      %57 = dma.hbm_to_vmem [thread:$0]  %s3, 5248, %s52, [#allocation7], 128, 128, 8
    $region17: #{tarm_forward.1} parent=1 // pred_fallthru
      _
    // Predicated region
    $region18: #{tarm_forward.1} parent=1 // pred_check
      _
    $region19: #{tarm_forward.1} parent=1 // pred_check_branch
      %59 = sbr.rel (0) target = $region21
    $region20: #{tarm_forward.1} parent=1 // pred_region
      %60 = dma.done [#allocation4], 16
    $region21: #{tarm_forward.1} parent=1 // pred_fallthru
      _
    // Predicated region
    $region22: #{tarm_forward.1} parent=1 // pred_check
      _
    $region23: #{tarm_forward.1} parent=1 // pred_check_branch
      %62 = sbr.rel (0) target = $region25
    $region24: #{tarm_forward.1} parent=1 // pred_region
      %63 = dma.done [#allocation3], 256
    $region25: #{tarm_forward.1} parent=1 // pred_fallthru
      _
    // Predicated region
    $region26: #{tarm_forward.1} parent=1 // pred_check
      _
    $region27: #{tarm_forward.1} parent=1 // pred_check_branch
      %65 = sbr.rel (0) target = $region29
    $region28: #{tarm_forward.1} parent=1 // pred_region
      %66 = dma.done [#allocation7], 256
    $region29: #{tarm_forward.1} parent=1 // pred_fallthru
      _
    // Predicated region
    $region30: #{tarm_forward.1} parent=1 // pred_check
      _
    $region31: #{tarm_forward.1} parent=1 // pred_check_branch
      %68 = sbr.rel (0) target = $region33
    $region32: #{tarm_forward.1} parent=1 // pred_region
      %69 = dma.done [#allocation7], 5248
    $region33: #{tarm_forward.1} parent=1 // pred_fallthru
      _
    %70 = sfence
    %v71 = vld [vmem:[#allocation5] sm:$0xff]
    %v72 = vld [vmem:[#allocation5 + $0x8] sm:$0xff]
    %v73 = vld [vmem:[#allocation6] sm:$0xff]
    %v74 = vld [vmem:[#allocation6 + $0x8] sm:$0xff]
    %77 = vrot.lane.b32.xlu0 %v73, 32
    %v78 = vpop.permute.xlu0 %77
    %79 = vrot.lane.b32.xlu0 %v74, 32
    %v80 = vpop.permute.xlu0 %79
    %vm83 = vcmask 261120
    %v84 = vsel %vm83, %v71, %v78
    %v85 = vsel %vm83, %v72, %v80
    %v86 = vlaneseq
    %v87 = vshrl.u32 %v86, 7
    %v88 = vadd.s32 %v87, 8
    %vm89 = vcmp.lt.s32.totalorder %v87, 0
    %v90 = vsub.s32 0, %v87
    %v91 = vsel %vm89, %v90, %v87
    %v92 = vshrl.u32 %v91, 3
    %v93 = vand.u32 %v91, 7
    %v94 = vsub.s32 0, %v93
    %v95 = vsel %vm89, %v94, %v93
    %vm96 = vcmp.lt.s32.totalorder %v88, 0
    %v97 = vsub.s32 0, %v88
    %v98 = vsel %vm96, %v97, %v88
    %v99 = vshrl.u32 %v98, 3
    %v100 = vand.u32 %v98, 7
    %v101 = vsub.s32 0, %v100
    %v102 = vsel %vm96, %v101, %v100
    %vm103 = vcmp.ne.s32.totalorder %v95, 0
    %vm104 = vcmp.ne.s32.totalorder %v102, 0
    %vm105 = vcmp.lt.s32.totalorder %v95, 0
    %vm106 = vcmp.lt.s32.totalorder %v102, 0
    %vm107 = vmand %vm105, %vm103
    %vm108 = vmand %vm106, %vm104
    %v109 = vadd.s32 %v95, 8
    %v110 = vadd.s32 %v102, 8
    %v111 = vsel %vm107, %v109, %v95
    %v112 = vsel %vm108, %v110, %v102
    %v113 = vld [vmem:[#allocation8] sm:$0xff]
    %v114 = vld [vmem:[#allocation8 + $0x8] sm:$0xff]
    %v115 = vld [vmem:[#allocation8 + $0x10] sm:$0xff]
    %v116 = vld [vmem:[#allocation8 + $0x18] sm:$0xff]
    %v117 = vld [vmem:[#allocation8 + $0x20] sm:$0xff]
    %v118 = vld [vmem:[#allocation8 + $0x28] sm:$0xff]
    %v119 = vld [vmem:[#allocation8 + $0x30] sm:$0xff]
    %v120 = vld [vmem:[#allocation8 + $0x38] sm:$0xff]
    %vm123 = vcmask 1040384
    %v124 = vrot.slane %v84, 7
    %v125 = vrot.slane %v85, 7
    %v126 = vsel %vm123, %v124, %v125
    %v129 = vsel %vm123, 0.0, %v124
    %v130 = vadd.s32 %v111, 4294967295
    %v131 = vadd.s32 %v112, 4294967295
    %vm132 = vcmp.ge.s32.totalorder %v130, 0
    %vm133 = vcmp.ge.s32.totalorder %v131, 0
    %vm134 = vcmp.lt.s32.totalorder %v130, 8
    %vm135 = vcmp.lt.s32.totalorder %v131, 8
    %vm136 = vmand %vm132, %vm134
    %vm137 = vmand %vm133, %vm135
    %v138 = vsel %vm136, %v129, 0.0
    %v139 = vsel %vm137, %v126, 0.0
    %v140 = vld [vmem:[#allocation8 + $0x40] sm:$0xff]
    %v141 = vld [vmem:[#allocation8 + $0x48] sm:$0xff]
    %v142 = vld [vmem:[#allocation8 + $0x50] sm:$0xff]
    %v143 = vld [vmem:[#allocation8 + $0x58] sm:$0xff]
    %v144 = vld [vmem:[#allocation8 + $0x60] sm:$0xff]
    %v145 = vld [vmem:[#allocation8 + $0x68] sm:$0xff]
    %v146 = vld [vmem:[#allocation8 + $0x70] sm:$0xff]
    %v147 = vld [vmem:[#allocation8 + $0x78] sm:$0xff]
    %vm148 = vcmask 523264
    %v149 = vsel %vm148, %v84, 0
    %v151 = vsel %vm148, %v85, 0
    %153 = vmatprep.subr.mxu0 0.0
    %154 = vmatpush1.msra.mxu0 %v140
    %155 = vmatprep.subr.mxu0 0.0
    %156 = vmatpush1.msra.mxu0 %v141
    %157 = vmatprep.subr.mxu0 0.0
    %158 = vmatpush1.msra.mxu0 %v142
    %159 = vmatprep.subr.mxu0 0.0
    %160 = vmatpush1.msra.mxu0 %v143
    %161 = vmatprep.subr.mxu0 0.0
    %162 = vmatpush1.msra.mxu0 %v144
    %163 = vmatprep.subr.mxu0 0.0
    %164 = vmatpush1.msra.mxu0 %v145
    %165 = vmatprep.subr.mxu0 0.0
    %166 = vmatpush1.msra.mxu0 %v146
    %167 = vmatprep.subr.mxu0 0.0
    %168 = vmatpush1.msra.mxu0 %v147
    %169 = vmatprep.subr.mxu0 0.0
    %170 = vmatpush1.msra.mxu0 0.0
    %171 = vmatprep.subr.mxu0 0.0
    %172 = vmatpush1.msra.mxu0 0.0
    %173 = vmatprep.subr.mxu0 0.0
    %174 = vmatpush1.msra.mxu0 0.0
    %175 = vmatprep.subr.mxu0 0.0
    %176 = vmatpush1.msra.mxu0 0.0
    %177 = vmatprep.subr.mxu0 0.0
    %178 = vmatpush1.msra.mxu0 0.0
    %179 = vmatprep.subr.mxu0 0.0
    %180 = vmatpush1.msra.mxu0 0.0
    %181 = vmatprep.subr.mxu0 0.0
    %182 = vmatpush1.msra.mxu0 0.0
    %183 = vmatprep.subr.mxu0 0.0
    %184 = vmatpush1.msra.mxu0 0.0
    %185 = vmatprep.subr.mxu0 0.0
    %186 = vmatpush1.msra.mxu0 0.0
    %187 = vmatprep.subr.mxu0 0.0
    %188 = vmatpush1.msra.mxu0 0.0
    %189 = vmatprep.subr.mxu0 0.0
    %190 = vmatpush1.msra.mxu0 0.0
    %191 = vmatprep.subr.mxu0 0.0
    %192 = vmatpush1.msra.mxu0 0.0
    %193 = vmatprep.subr.mxu0 0.0
    %194 = vmatpush1.msra.mxu0 0.0
    %195 = vmatprep.subr.mxu0 0.0
    %196 = vmatpush1.msra.mxu0 0.0
    %197 = vmatprep.subr.mxu0 0.0
    %198 = vmatpush1.msra.mxu0 0.0
    %199 = vmatprep.subr.mxu0 0.0
    %200 = vmatpush1.msra.mxu0 0.0
    %201 = vmatprep.subr.mxu0 0.0
    %202 = vmatpush1.msra.mxu0 0.0
    %203 = vmatprep.subr.mxu0 0.0
    %204 = vmatpush1.msra.mxu0 0.0
    %205 = vmatprep.subr.mxu0 0.0
    %206 = vmatpush1.msra.mxu0 0.0
    %207 = vmatprep.subr.mxu0 0.0
    %208 = vmatpush1.msra.mxu0 0.0
    %209 = vmatprep.subr.mxu0 0.0
    %210 = vmatpush1.msra.mxu0 0.0
    %211 = vmatprep.subr.mxu0 0.0
    %212 = vmatpush1.msra.mxu0 0.0
    %213 = vmatprep.subr.mxu0 0.0
    %214 = vmatpush1.msra.mxu0 0.0
    %215 = vmatprep.subr.mxu0 0.0
    %216 = vmatpush1.msra.mxu0 0.0
    %217 = vmatprep.mubr.f32.mxu0 0.0
    %218 = vmatmul.mubr.f32.gmra.mrb[0].mxu0 %v149
    %v219 = vpop.f32.mrb[0].mxu0
    %v220 = vadd.f32 0.0, %v219
    %v221 = vpop.f32.mrb[0].mxu0
    %222 = vmatprep.mubr.f32.mxu0 0.0
    %223 = vmatmul.mubr.f32.gmra.mrb[0].mxu0 %v151
    %v224 = vpop.f32.mrb[0].mxu0
    %v225 = vadd.f32 0.0, %v224
    %v226 = vpop.f32.mrb[0].mxu0
    %227 = vdwg.mxu0
    %v229 = vsel %vm148, %v138, 0
    %v232 = vsel %vm148, %v139, 0
    %234 = vmatprep.subr.mxu0 0.0
    %235 = vmatpush1.msra.mxu0 %v113
    %236 = vmatprep.subr.mxu0 0.0
    %237 = vmatpush1.msra.mxu0 %v114
    %238 = vmatprep.subr.mxu0 0.0
    %239 = vmatpush1.msra.mxu0 %v115
    %240 = vmatprep.subr.mxu0 0.0
    %241 = vmatpush1.msra.mxu0 %v116
    %242 = vmatprep.subr.mxu0 0.0
    %243 = vmatpush1.msra.mxu0 %v117
    %244 = vmatprep.subr.mxu0 0.0
    %245 = vmatpush1.msra.mxu0 %v118
    %246 = vmatprep.subr.mxu0 0.0
    %247 = vmatpush1.msra.mxu0 %v119
    %248 = vmatprep.subr.mxu0 0.0
    %249 = vmatpush1.msra.mxu0 %v120
    %250 = vmatprep.subr.mxu0 0.0
    %251 = vmatpush1.msra.mxu0 0.0
    %252 = vmatprep.subr.mxu0 0.0
    %253 = vmatpush1.msra.mxu0 0.0
    %254 = vmatprep.subr.mxu0 0.0
    %255 = vmatpush1.msra.mxu0 0.0
    %256 = vmatprep.subr.mxu0 0.0
    %257 = vmatpush1.msra.mxu0 0.0
    %258 = vmatprep.subr.mxu0 0.0
    %259 = vmatpush1.msra.mxu0 0.0
    %260 = vmatprep.subr.mxu0 0.0
    %261 = vmatpush1.msra.mxu0 0.0
    %262 = vmatprep.subr.mxu0 0.0
    %263 = vmatpush1.msra.mxu0 0.0
    %264 = vmatprep.subr.mxu0 0.0
    %265 = vmatpush1.msra.mxu0 0.0
    %266 = vmatprep.subr.mxu0 0.0
    %267 = vmatpush1.msra.mxu0 0.0
    %268 = vmatprep.subr.mxu0 0.0
    %269 = vmatpush1.msra.mxu0 0.0
    %270 = vmatprep.subr.mxu0 0.0
    %271 = vmatpush1.msra.mxu0 0.0
    %272 = vmatprep.subr.mxu0 0.0
    %273 = vmatpush1.msra.mxu0 0.0
    %274 = vmatprep.subr.mxu0 0.0
    %275 = vmatpush1.msra.mxu0 0.0
    %276 = vmatprep.subr.mxu0 0.0
    %277 = vmatpush1.msra.mxu0 0.0
    %278 = vmatprep.subr.mxu0 0.0
    %279 = vmatpush1.msra.mxu0 0.0
    %280 = vmatprep.subr.mxu0 0.0
    %281 = vmatpush1.msra.mxu0 0.0
    %282 = vmatprep.subr.mxu0 0.0
    %283 = vmatpush1.msra.mxu0 0.0
    %284 = vmatprep.subr.mxu0 0.0
    %285 = vmatpush1.msra.mxu0 0.0
    %286 = vmatprep.subr.mxu0 0.0
    %287 = vmatpush1.msra.mxu0 0.0
    %288 = vmatprep.subr.mxu0 0.0
    %289 = vmatpush1.msra.mxu0 0.0
    %290 = vmatprep.subr.mxu0 0.0
    %291 = vmatpush1.msra.mxu0 0.0
    %292 = vmatprep.subr.mxu0 0.0
    %293 = vmatpush1.msra.mxu0 0.0
    %294 = vmatprep.subr.mxu0 0.0
    %295 = vmatpush1.msra.mxu0 0.0
    %296 = vmatprep.subr.mxu0 0.0
    %297 = vmatpush1.msra.mxu0 0.0
    %298 = vmatprep.mubr.f32.mxu0 0.0
    %299 = vmatmul.mubr.f32.gmra.mrb[0].mxu0 %v229
    %v300 = vpop.f32.mrb[0].mxu0
    %v301 = vadd.f32 %v220, %v300
    %v302 = vpop.f32.mrb[0].mxu0
    %303 = vmatprep.mubr.f32.mxu0 0.0
    %304 = vmatmul.mubr.f32.gmra.mrb[0].mxu0 %v232
    %v305 = vpop.f32.mrb[0].mxu0
    %v306 = vadd.f32 %v225, %v305
    %v307 = vpop.f32.mrb[0].mxu0
    %308 = vdwg.mxu0
    %v309 = vld [vmem:[#allocation8 + $0x80] sm:$0xff]
    %v310 = vld [vmem:[#allocation8 + $0x88] sm:$0xff]
    %v311 = vld [vmem:[#allocation8 + $0x90] sm:$0xff]
    %v312 = vld [vmem:[#allocation8 + $0x98] sm:$0xff]
    %v313 = vld [vmem:[#allocation8 + $0xa0] sm:$0xff]
    %v314 = vld [vmem:[#allocation8 + $0xa8] sm:$0xff]
    %v315 = vld [vmem:[#allocation8 + $0xb0] sm:$0xff]
    %v316 = vld [vmem:[#allocation8 + $0xb8] sm:$0xff]
    %vm317 = vcmask 1046528
    %v318 = vrot.slane %v84, 1
    %v319 = vrot.slane %v85, 1
    %v320 = vsel %vm317, %v318, %v319
    %v323 = vsel %vm317, %v319, 0.0
    %v324 = vadd.s32 %v111, 1
    %v325 = vadd.s32 %v112, 1
    %vm326 = vcmp.ge.s32.totalorder %v324, 0
    %vm327 = vcmp.ge.s32.totalorder %v325, 0
    %vm328 = vcmp.lt.s32.totalorder %v324, 8
    %vm329 = vcmp.lt.s32.totalorder %v325, 8
    %vm330 = vmand %vm326, %vm328
    %vm331 = vmand %vm327, %vm329
    %v332 = vsel %vm330, %v320, 0.0
    %v333 = vsel %vm331, %v323, 0.0
    %v335 = vsel %vm148, %v332, 0
    %v338 = vsel %vm148, %v333, 0
    %340 = vmatprep.subr.mxu0 0.0
    %341 = vmatpush1.msra.mxu0 %v309
    %342 = vmatprep.subr.mxu0 0.0
    %343 = vmatpush1.msra.mxu0 %v310
    %344 = vmatprep.subr.mxu0 0.0
    %345 = vmatpush1.msra.mxu0 %v311
    %346 = vmatprep.subr.mxu0 0.0
    %347 = vmatpush1.msra.mxu0 %v312
    %348 = vmatprep.subr.mxu0 0.0
    %349 = vmatpush1.msra.mxu0 %v313
    %350 = vmatprep.subr.mxu0 0.0
    %351 = vmatpush1.msra.mxu0 %v314
    %352 = vmatprep.subr.mxu0 0.0
    %353 = vmatpush1.msra.mxu0 %v315
    %354 = vmatprep.subr.mxu0 0.0
    %355 = vmatpush1.msra.mxu0 %v316
    %356 = vmatprep.subr.mxu0 0.0
    %357 = vmatpush1.msra.mxu0 0.0
    %358 = vmatprep.subr.mxu0 0.0
    %359 = vmatpush1.msra.mxu0 0.0
    %360 = vmatprep.subr.mxu0 0.0
    %361 = vmatpush1.msra.mxu0 0.0
    %362 = vmatprep.subr.mxu0 0.0
    %363 = vmatpush1.msra.mxu0 0.0
    %364 = vmatprep.subr.mxu0 0.0
    %365 = vmatpush1.msra.mxu0 0.0
    %366 = vmatprep.subr.mxu0 0.0
    %367 = vmatpush1.msra.mxu0 0.0
    %368 = vmatprep.subr.mxu0 0.0
    %369 = vmatpush1.msra.mxu0 0.0
    %370 = vmatprep.subr.mxu0 0.0
    %371 = vmatpush1.msra.mxu0 0.0
    %372 = vmatprep.subr.mxu0 0.0
    %373 = vmatpush1.msra.mxu0 0.0
    %374 = vmatprep.subr.mxu0 0.0
    %375 = vmatpush1.msra.mxu0 0.0
    %376 = vmatprep.subr.mxu0 0.0
    %377 = vmatpush1.msra.mxu0 0.0
    %378 = vmatprep.subr.mxu0 0.0
    %379 = vmatpush1.msra.mxu0 0.0
    %380 = vmatprep.subr.mxu0 0.0
    %381 = vmatpush1.msra.mxu0 0.0
    %382 = vmatprep.subr.mxu0 0.0
    %383 = vmatpush1.msra.mxu0 0.0
    %384 = vmatprep.subr.mxu0 0.0
    %385 = vmatpush1.msra.mxu0 0.0
    %386 = vmatprep.subr.mxu0 0.0
    %387 = vmatpush1.msra.mxu0 0.0
    %388 = vmatprep.subr.mxu0 0.0
    %389 = vmatpush1.msra.mxu0 0.0
    %390 = vmatprep.subr.mxu0 0.0
    %391 = vmatpush1.msra.mxu0 0.0
    %392 = vmatprep.subr.mxu0 0.0
    %393 = vmatpush1.msra.mxu0 0.0
    %394 = vmatprep.subr.mxu0 0.0
    %395 = vmatpush1.msra.mxu0 0.0
    %396 = vmatprep.subr.mxu0 0.0
    %397 = vmatpush1.msra.mxu0 0.0
    %398 = vmatprep.subr.mxu0 0.0
    %399 = vmatpush1.msra.mxu0 0.0
    %400 = vmatprep.subr.mxu0 0.0
    %401 = vmatpush1.msra.mxu0 0.0
    %402 = vmatprep.subr.mxu0 0.0
    %403 = vmatpush1.msra.mxu0 0.0
    %404 = vmatprep.mubr.f32.mxu0 0.0
    %405 = vmatmul.mubr.f32.gmra.mrb[0].mxu0 %v335
    %v406 = vpop.f32.mrb[0].mxu0
    %v407 = vadd.f32 0.0, %v406
    %v408 = vpop.f32.mrb[0].mxu0
    %409 = vmatprep.mubr.f32.mxu0 0.0
    %410 = vmatmul.mubr.f32.gmra.mrb[0].mxu0 %v338
    %v411 = vpop.f32.mrb[0].mxu0
    %v412 = vadd.f32 0.0, %v411
    %v413 = vpop.f32.mrb[0].mxu0
    %414 = vdwg.mxu0
    %v415 = vadd.f32 %v301, %v407
    %v416 = vadd.f32 %v306, %v412
    %v417 = vld [vmem:[#allocation8 + $0x140] sm:$0xf]
    %v418 = vlaneseq
    %v419 = vshrl.u32 %v418, 7
    %v420 = vsub.s32 0, %v419
    %v421 = vrot.slane %v417, %v420
    %v422 = vadd.f32 %v415, %v421
    %v423 = vadd.f32 %v416, %v421
    %v424 = vmax.f32 %v422, 0.0
    %v425 = vmax.f32 %v423, 0.0
    %v426 = vlaneseq
    %v427 = vand.u32 %v426, 127
    %vm428 = vcmp.lt.s32.totalorder %v427, 16
    %s429 = sld [smem:[#allocation2]]
    %s430 = sld [smem:[#allocation2 + $0x2]]
    %v431 = vstv %s429
    %v432 = vstv %s430
    %v433 = vsel %vm428, %v431, %v432
    %vm434 = vcmp.lt.s32.totalorder %v87, %v433
    %v435 = vsel %vm434, %v424, 0.0
    %v436 = vsel %vm83, %v435, -inf
    %v437 = vrot.slane %v436, 4
    %v438 = vmax.f32 %v436, %v437
    %v439 = vrot.slane %v438, 2
    %v440 = vmax.f32 %v438, %v439
    %v441 = vrot.slane %v440, 1
    %v442 = vmax.f32 %v440, %v441
    %s443 = sld [smem:[#allocation2 + $0x1]]
    %s444 = sld [smem:[#allocation2 + $0x3]]
    %v445 = vstv %s443
    %v446 = vstv %s444
    %v447 = vsel %vm428, %v445, %v446
    %vm448 = vcmp.lt.s32.totalorder %v87, %v447
    %v449 = vsel %vm448, %v425, 0.0
    %v450 = vsel %vm83, %v449, -inf
    %v451 = vrot.slane %v450, 4
    %v452 = vmax.f32 %v450, %v451
    %v453 = vrot.slane %v452, 2
    %v454 = vmax.f32 %v452, %v453
    %v455 = vrot.slane %v454, 1
    %v456 = vmax.f32 %v454, %v455
    %v457 = vsel %vm123, %v442, %v456
    %v458 = vld [vmem:[#allocation8 + $0xc0] sm:$0xff]
    %v459 = vld [vmem:[#allocation8 + $0xc8] sm:$0xff]
    %v460 = vld [vmem:[#allocation8 + $0xd0] sm:$0xff]
    %v461 = vld [vmem:[#allocation8 + $0xd8] sm:$0xff]
    %v462 = vlaneseq
    %v463 = vshrl.u32 %v462, 7
    %v464 = vsub.s32 1, %v463
    %v465 = vrot.slane %v417, %v464
    %v467 = vsel %vm83, %v457, 0
    %469 = vmatprep.subr.mxu0 0.0
    %470 = vmatpush1.msra.mxu0 %v458
    %471 = vmatprep.subr.mxu0 0.0
    %472 = vmatpush1.msra.mxu0 %v459
    %473 = vmatprep.subr.mxu0 0.0
    %474 = vmatpush1.msra.mxu0 %v460
    %475 = vmatprep.subr.mxu0 0.0
    %476 = vmatpush1.msra.mxu0 %v461
    %477 = vmatprep.subr.mxu0 0.0
    %478 = vmatpush1.msra.mxu0 0.0
    %479 = vmatprep.subr.mxu0 0.0
    %480 = vmatpush1.msra.mxu0 0.0
    %481 = vmatprep.subr.mxu0 0.0
    %482 = vmatpush1.msra.mxu0 0.0
    %483 = vmatprep.subr.mxu0 0.0
    %484 = vmatpush1.msra.mxu0 0.0
    %485 = vmatprep.subr.mxu0 0.0
    %486 = vmatpush1.msra.mxu0 0.0
    %487 = vmatprep.subr.mxu0 0.0
    %488 = vmatpush1.msra.mxu0 0.0
    %489 = vmatprep.subr.mxu0 0.0
    %490 = vmatpush1.msra.mxu0 0.0
    %491 = vmatprep.subr.mxu0 0.0
    %492 = vmatpush1.msra.mxu0 0.0
    %493 = vmatprep.subr.mxu0 0.0
    %494 = vmatpush1.msra.mxu0 0.0
    %495 = vmatprep.subr.mxu0 0.0
    %496 = vmatpush1.msra.mxu0 0.0
    %497 = vmatprep.subr.mxu0 0.0
    %498 = vmatpush1.msra.mxu0 0.0
    %499 = vmatprep.subr.mxu0 0.0
    %500 = vmatpush1.msra.mxu0 0.0
    %501 = vmatprep.subr.mxu0 0.0
    %502 = vmatpush1.msra.mxu0 0.0
    %503 = vmatprep.subr.mxu0 0.0
    %504 = vmatpush1.msra.mxu0 0.0
    %505 = vmatprep.subr.mxu0 0.0
    %506 = vmatpush1.msra.mxu0 0.0
    %507 = vmatprep.subr.mxu0 0.0
    %508 = vmatpush1.msra.mxu0 0.0
    %509 = vmatprep.subr.mxu0 0.0
    %510 = vmatpush1.msra.mxu0 0.0
    %511 = vmatprep.subr.mxu0 0.0
    %512 = vmatpush1.msra.mxu0 0.0
    %513 = vmatprep.subr.mxu0 0.0
    %514 = vmatpush1.msra.mxu0 0.0
    %515 = vmatprep.subr.mxu0 0.0
    %516 = vmatpush1.msra.mxu0 0.0
    %517 = vmatprep.subr.mxu0 0.0
    %518 = vmatpush1.msra.mxu0 0.0
    %519 = vmatprep.subr.mxu0 0.0
    %520 = vmatpush1.msra.mxu0 0.0
    %521 = vmatprep.subr.mxu0 0.0
    %522 = vmatpush1.msra.mxu0 0.0
    %523 = vmatprep.subr.mxu0 0.0
    %524 = vmatpush1.msra.mxu0 0.0
    %525 = vmatprep.subr.mxu0 0.0
    %526 = vmatpush1.msra.mxu0 0.0
    %527 = vmatprep.subr.mxu0 0.0
    %528 = vmatpush1.msra.mxu0 0.0
    %529 = vmatprep.subr.mxu0 0.0
    %530 = vmatpush1.msra.mxu0 0.0
    %531 = vmatprep.subr.mxu0 0.0
    %532 = vmatpush1.msra.mxu0 0.0
    %533 = vmatprep.mubr.f32.mxu0 0.0
    %534 = vmatmul.mubr.f32.gmra.mrb[0].mxu0 %v467
    %v535 = vpop.f32.mrb[0].mxu0
    %v536 = vadd.f32 %v465, %v535
    %v537 = vpop.f32.mrb[0].mxu0
    %538 = vdwg.mxu0
    %v539 = vtanh.pop %v536
    %v540 = vld [vmem:[#allocation8 + $0xe0] sm:$0xff]
    %v541 = vld [vmem:[#allocation8 + $0xe8] sm:$0xff]
    %v542 = vld [vmem:[#allocation8 + $0xf0] sm:$0xff]
    %v543 = vld [vmem:[#allocation8 + $0xf8] sm:$0xff]
    %v544 = vld [vmem:[#allocation8 + $0x100] sm:$0xff]
    %v545 = vld [vmem:[#allocation8 + $0x108] sm:$0xff]
    %v546 = vld [vmem:[#allocation8 + $0x110] sm:$0xff]
    %v547 = vld [vmem:[#allocation8 + $0x118] sm:$0xff]
    %v548 = vlaneseq
    %v549 = vshrl.u32 %v548, 7
    %v550 = vsub.s32 2, %v549
    %v551 = vrot.slane %v417, %v550
    %v553 = vsel %vm148, %v539, 0
    %555 = vmatprep.subr.mxu0 0.0
    %556 = vmatpush1.msra.mxu0 %v540
    %557 = vmatprep.subr.mxu0 0.0
    %558 = vmatpush1.msra.mxu0 %v541
    %559 = vmatprep.subr.mxu0 0.0
    %560 = vmatpush1.msra.mxu0 %v542
    %561 = vmatprep.subr.mxu0 0.0
    %562 = vmatpush1.msra.mxu0 %v543
    %563 = vmatprep.subr.mxu0 0.0
    %564 = vmatpush1.msra.mxu0 %v544
    %565 = vmatprep.subr.mxu0 0.0
    %566 = vmatpush1.msra.mxu0 %v545
    %567 = vmatprep.subr.mxu0 0.0
    %568 = vmatpush1.msra.mxu0 %v546
    %569 = vmatprep.subr.mxu0 0.0
    %570 = vmatpush1.msra.mxu0 %v547
    %571 = vmatprep.subr.mxu0 0.0
    %572 = vmatpush1.msra.mxu0 0.0
    %573 = vmatprep.subr.mxu0 0.0
    %574 = vmatpush1.msra.mxu0 0.0
    %575 = vmatprep.subr.mxu0 0.0
    %576 = vmatpush1.msra.mxu0 0.0
    %577 = vmatprep.subr.mxu0 0.0
    %578 = vmatpush1.msra.mxu0 0.0
    %579 = vmatprep.subr.mxu0 0.0
    %580 = vmatpush1.msra.mxu0 0.0
    %581 = vmatprep.subr.mxu0 0.0
    %582 = vmatpush1.msra.mxu0 0.0
    %583 = vmatprep.subr.mxu0 0.0
    %584 = vmatpush1.msra.mxu0 0.0
    %585 = vmatprep.subr.mxu0 0.0
    %586 = vmatpush1.msra.mxu0 0.0
    %587 = vmatprep.subr.mxu0 0.0
    %588 = vmatpush1.msra.mxu0 0.0
    %589 = vmatprep.subr.mxu0 0.0
    %590 = vmatpush1.msra.mxu0 0.0
    %591 = vmatprep.subr.mxu0 0.0
    %592 = vmatpush1.msra.mxu0 0.0
    %593 = vmatprep.subr.mxu0 0.0
    %594 = vmatpush1.msra.mxu0 0.0
    %595 = vmatprep.subr.mxu0 0.0
    %596 = vmatpush1.msra.mxu0 0.0
    %597 = vmatprep.subr.mxu0 0.0
    %598 = vmatpush1.msra.mxu0 0.0
    %599 = vmatprep.subr.mxu0 0.0
    %600 = vmatpush1.msra.mxu0 0.0
    %601 = vmatprep.subr.mxu0 0.0
    %602 = vmatpush1.msra.mxu0 0.0
    %603 = vmatprep.subr.mxu0 0.0
    %604 = vmatpush1.msra.mxu0 0.0
    %605 = vmatprep.subr.mxu0 0.0
    %606 = vmatpush1.msra.mxu0 0.0
    %607 = vmatprep.subr.mxu0 0.0
    %608 = vmatpush1.msra.mxu0 0.0
    %609 = vmatprep.subr.mxu0 0.0
    %610 = vmatpush1.msra.mxu0 0.0
    %611 = vmatprep.subr.mxu0 0.0
    %612 = vmatpush1.msra.mxu0 0.0
    %613 = vmatprep.subr.mxu0 0.0
    %614 = vmatpush1.msra.mxu0 0.0
    %615 = vmatprep.subr.mxu0 0.0
    %616 = vmatpush1.msra.mxu0 0.0
    %617 = vmatprep.subr.mxu0 0.0
    %618 = vmatpush1.msra.mxu0 0.0
    %619 = vmatprep.mubr.f32.mxu0 0.0
    %620 = vmatmul.mubr.f32.gmra.mrb[0].mxu0 %v553
    %v621 = vpop.f32.mrb[0].mxu0
    %v622 = vadd.f32 %v551, %v621
    %v623 = vpop.f32.mrb[0].mxu0
    %624 = vdwg.mxu0
    %v625 = vtanh.pop %v622
    %v626 = vld [vmem:[#allocation8 + $0x120] sm:$0xff]
    %v627 = vld [vmem:[#allocation8 + $0x128] sm:$0xff]
    %v628 = vld [vmem:[#allocation8 + $0x130] sm:$0xff]
    %v629 = vld [vmem:[#allocation8 + $0x138] sm:$0xff]
    %v630 = vlaneseq
    %v631 = vshrl.u32 %v630, 7
    %v632 = vsub.s32 3, %v631
    %v633 = vrot.slane %v417, %v632
    %v635 = vsel %vm83, %v625, 0
    %637 = vmatprep.subr.mxu0 0.0
    %638 = vmatpush1.msra.mxu0 %v626
    %639 = vmatprep.subr.mxu0 0.0
    %640 = vmatpush1.msra.mxu0 %v627
    %641 = vmatprep.subr.mxu0 0.0
    %642 = vmatpush1.msra.mxu0 %v628
    %643 = vmatprep.subr.mxu0 0.0
    %644 = vmatpush1.msra.mxu0 %v629
    %645 = vmatprep.subr.mxu0 0.0
    %646 = vmatpush1.msra.mxu0 0.0
    %647 = vmatprep.subr.mxu0 0.0
    %648 = vmatpush1.msra.mxu0 0.0
    %649 = vmatprep.subr.mxu0 0.0
    %650 = vmatpush1.msra.mxu0 0.0
    %651 = vmatprep.subr.mxu0 0.0
    %652 = vmatpush1.msra.mxu0 0.0
    %653 = vmatprep.subr.mxu0 0.0
    %654 = vmatpush1.msra.mxu0 0.0
    %655 = vmatprep.subr.mxu0 0.0
    %656 = vmatpush1.msra.mxu0 0.0
    %657 = vmatprep.subr.mxu0 0.0
    %658 = vmatpush1.msra.mxu0 0.0
    %659 = vmatprep.subr.mxu0 0.0
    %660 = vmatpush1.msra.mxu0 0.0
    %661 = vmatprep.subr.mxu0 0.0
    %662 = vmatpush1.msra.mxu0 0.0
    %663 = vmatprep.subr.mxu0 0.0
    %664 = vmatpush1.msra.mxu0 0.0
    %665 = vmatprep.subr.mxu0 0.0
    %666 = vmatpush1.msra.mxu0 0.0
    %667 = vmatprep.subr.mxu0 0.0
    %668 = vmatpush1.msra.mxu0 0.0
    %669 = vmatprep.subr.mxu0 0.0
    %670 = vmatpush1.msra.mxu0 0.0
    %671 = vmatprep.subr.mxu0 0.0
    %672 = vmatpush1.msra.mxu0 0.0
    %673 = vmatprep.subr.mxu0 0.0
    %674 = vmatpush1.msra.mxu0 0.0
    %675 = vmatprep.subr.mxu0 0.0
    %676 = vmatpush1.msra.mxu0 0.0
    %677 = vmatprep.subr.mxu0 0.0
    %678 = vmatpush1.msra.mxu0 0.0
    %679 = vmatprep.subr.mxu0 0.0
    %680 = vmatpush1.msra.mxu0 0.0
    %681 = vmatprep.subr.mxu0 0.0
    %682 = vmatpush1.msra.mxu0 0.0
    %683 = vmatprep.subr.mxu0 0.0
    %684 = vmatpush1.msra.mxu0 0.0
    %685 = vmatprep.subr.mxu0 0.0
    %686 = vmatpush1.msra.mxu0 0.0
    %687 = vmatprep.subr.mxu0 0.0
    %688 = vmatpush1.msra.mxu0 0.0
    %689 = vmatprep.subr.mxu0 0.0
    %690 = vmatpush1.msra.mxu0 0.0
    %691 = vmatprep.subr.mxu0 0.0
    %692 = vmatpush1.msra.mxu0 0.0
    %693 = vmatprep.subr.mxu0 0.0
    %694 = vmatpush1.msra.mxu0 0.0
    %695 = vmatprep.subr.mxu0 0.0
    %696 = vmatpush1.msra.mxu0 0.0
    %697 = vmatprep.subr.mxu0 0.0
    %698 = vmatpush1.msra.mxu0 0.0
    %699 = vmatprep.subr.mxu0 0.0
    %700 = vmatpush1.msra.mxu0 0.0
    %701 = vmatprep.mubr.f32.mxu0 0.0
    %702 = vmatmul.mubr.f32.gmra.mrb[0].mxu0 %v635
    %v703 = vpop.f32.mrb[0].mxu0
    %v704 = vadd.f32 %v633, %v703
    %v705 = vpop.f32.mrb[0].mxu0
    %706 = vdwg.mxu0
    %v707 = vtanh.pop %v704
    %709 = vrot.lane.b32.xlu0 %v707, 32
    %v710 = vpop.permute.xlu0 %709
    %v712 = vsel %vm83, %v625, %v710
    %vm713 = vcmask 293888
    %v714 = vsel %vm713, %v712, 0.0
    %vm715 = vcmask 1041408
    %v716 = vsel %vm715, %v714, 0.0
    %717 = vst [vmem:[%s4] sm:$0xff] %v716
    // Predicated region
    $region34: #{tarm_forward.1} parent=1 // pred_check
      _
    $region35: #{tarm_forward.1} parent=1 // pred_check_branch
      %719 = sbr.rel (0) target = $region37
    $region36: #{tarm_forward.1} parent=1 // pred_region
      _
    $region37: #{tarm_forward.1} parent=1 // pred_fallthru
      _
    // Predicated region
    $region38: #{tarm_forward.1} parent=1 // pred_check
      _
    $region39: #{tarm_forward.1} parent=1 // pred_check_branch
      %721 = sbr.rel (0) target = $region41
    $region40: #{tarm_forward.1} parent=1 // pred_region
      _
    $region41: #{tarm_forward.1} parent=1 // pred_fallthru
      _
    %722 = vsyncpa [#allocation3], 1
    %723 = vsyncpa [#allocation7], 1
    %724 = vsyncpa [#allocation4], 1

</llo_original>
